<compile_context>
chip_gen: v5e
topology: v5e:2x2
jax: 0.10.0
libtpu: 0.0.40
codegen_flags: <defaults>
</compile_context>

<pallas_src>
import functools

import jax
import jax.numpy as jnp
from jax import lax
from jax.experimental import pallas as pl
from jax.experimental.pallas import tpu as pltpu


def _round_up(x, m):
    return ((x + m - 1) // m) * m


# ----------------------------------------------------------------------------
# Tiled linear projection kernels (weight pre-transposed to (in, out))
# ----------------------------------------------------------------------------
def _matmul_kernel(x_ref, w_ref, o_ref):
    # x: (TR, Cin), w: (Cin, Cout); fp32 accumulation on the MXU, no up-cast.
    o_ref[...] = jnp.dot(x_ref[...], w_ref[...],
                         preferred_element_type=jnp.float32).astype(o_ref.dtype)


def _matmul_bias_kernel(x_ref, w_ref, b_ref, o_ref):
    y = jnp.dot(x_ref[...], w_ref[...], preferred_element_type=jnp.float32)
    o_ref[...] = (y + b_ref[...].astype(jnp.float32)).astype(o_ref.dtype)


def pallas_linear(x2d, w_t, bias=None, *, tile_r=512):
    """y = x2d @ w_t (+ bias).  x2d: (R, Cin), w_t: (Cin, Cout) pre-transposed."""
    R, Cin = x2d.shape
    Cout = w_t.shape[1]

    tr = tile_r if R >= tile_r else _round_up(R, 8)
    r_pad = _round_up(R, tr)
    if r_pad != R:
        x2d = jnp.pad(x2d, ((0, r_pad - R), (0, 0)))

    in_specs = [pl.BlockSpec((tr, Cin), lambda i: (i, 0)),
                pl.BlockSpec((Cin, Cout), lambda i: (0, 0))]   # weight VMEM-resident
    args = [x2d, w_t]
    if bias is not None:
        in_specs.append(pl.BlockSpec((1, Cout), lambda i: (0, 0)))
        args.append(bias.reshape(1, Cout))
        kernel = _matmul_bias_kernel
    else:
        kernel = _matmul_kernel

    y = pl.pallas_call(
        kernel,
        out_shape=jax.ShapeDtypeStruct((r_pad, Cout), x2d.dtype),
        grid=(r_pad // tr,),
        in_specs=in_specs,
        out_specs=pl.BlockSpec((tr, Cout), lambda i: (i, 0)),
        compiler_params=pltpu.CompilerParams(dimension_semantics=("parallel",)),
    )(*args)
    return y[:R] if r_pad != R else y


# ----------------------------------------------------------------------------
# Flash-style attention kernel: all heads per step, lane-dense (TQ, H*d) output
# ----------------------------------------------------------------------------
def _flash_attn_kernel(q_ref, k_ref, v_ref, o_ref, m_ref, l_ref, acc_ref, *,
                       heads, dim_head, scale, kv_len, kv_tile, need_mask):
    mi = pl.program_id(2)

    @pl.when(mi == 0)
    def _():
        m_ref[...] = jnp.full_like(m_ref, -1e30)
        l_ref[...] = jnp.zeros_like(l_ref)
        acc_ref[...] = jnp.zeros_like(acc_ref)

    # Load the full tiles once; slice per head in registers.
    q = q_ref[0]                                             # (TQ, H*d)
    k = k_ref[0]                                             # (TK, H*d)
    v = v_ref[0]                                             # (TK, H*d)

    if need_mask:  # KV length padded up to a multiple of kv_tile -> mask the tail
        col = mi * kv_tile + lax.broadcasted_iota(jnp.int32, (1, kv_tile), 1)
        neg = jnp.where(col < kv_len, 0.0, -1e30).astype(jnp.float32)   # (1, TK)

    d = dim_head
    for h in range(heads):                                   # static unroll over heads
        qh = q[:, h * d:(h + 1) * d]                         # (TQ, d)
        kh = k[:, h * d:(h + 1) * d]                         # (TK, d)
        vh = v[:, h * d:(h + 1) * d]                         # (TK, d)

        # sim = (q @ k^T) * scale in fp32 (no in-kernel transpose).
        s = lax.dot_general(qh, kh, (((1,), (1,)), ((), ())),
                            preferred_element_type=jnp.float32) * scale  # (TQ, TK)
        if need_mask:
            s = s + neg

        m_prev = m_ref[:, h:h + 1]                                       # (TQ, 1)
        l_prev = l_ref[:, h:h + 1]
        m_new = jnp.maximum(m_prev, jnp.max(s, axis=-1, keepdims=True))
        alpha = jnp.exp(m_prev - m_new)
        p = jnp.exp(s - m_new)                                           # (TQ, TK)

        l_ref[:, h:h + 1] = alpha * l_prev + jnp.sum(p, axis=-1, keepdims=True)
        acc_ref[:, h * d:(h + 1) * d] = (
            alpha * acc_ref[:, h * d:(h + 1) * d]
            + jnp.dot(p.astype(vh.dtype), vh, preferred_element_type=jnp.float32))
        m_ref[:, h:h + 1] = m_new

    @pl.when(mi == pl.num_programs(2) - 1)
    def _():
        inv = pl.reciprocal(l_ref[...], approx=True)         # (TQ, H), EUP slot
        acc = acc_ref[...]
        pieces = [acc[:, h * d:(h + 1) * d] * inv[:, h:h + 1] for h in range(heads)]
        o_ref[0] = jnp.concatenate(pieces, axis=-1).astype(o_ref.dtype)  # lane-dense store


def pallas_attention(q, k, v, *, heads, dim_head, scale):
    """q: (B, N, H*d), k/v: (B, M, H*d) -> (B, N, H*d).  No head-split transposes."""
    B, N, HD = q.shape
    M = k.shape[1]
    assert HD == heads * dim_head

    tq = 256 if N >= 256 else _round_up(N, 8)
    tk = 512 if M >= 512 else _round_up(M, 8)
    n_pad = _round_up(N, tq)
    m_pad = _round_up(M, tk)

    if n_pad != N:                                   # padded query rows sliced off below
        q = jnp.pad(q, ((0, 0), (0, n_pad - N), (0, 0)))
    if m_pad != M:                                   # padded keys masked in-kernel
        k = jnp.pad(k, ((0, 0), (0, m_pad - M), (0, 0)))
        v = jnp.pad(v, ((0, 0), (0, m_pad - M), (0, 0)))

    kernel = functools.partial(
        _flash_attn_kernel, heads=heads, dim_head=dim_head, scale=scale,
        kv_len=M, kv_tile=tk, need_mask=(m_pad != M))

    itemsize = jnp.dtype(q.dtype).itemsize
    cost = pl.CostEstimate(
        flops=4 * B * heads * n_pad * m_pad * dim_head,
        transcendentals=B * heads * n_pad * m_pad,
        bytes_accessed=itemsize * (2 * B * n_pad * HD + 2 * B * m_pad * HD))

    out = pl.pallas_call(
        kernel,
        out_shape=jax.ShapeDtypeStruct((B, n_pad, HD), q.dtype),
        grid=(B, n_pad // tq, m_pad // tk),
        in_specs=[
            pl.BlockSpec((1, tq, HD), lambda b, qi, mi: (b, qi, 0)),
            pl.BlockSpec((1, tk, HD), lambda b, qi, mi: (b, mi, 0)),
            pl.BlockSpec((1, tk, HD), lambda b, qi, mi: (b, mi, 0)),
        ],
        out_specs=pl.BlockSpec((1, tq, HD), lambda b, qi, mi: (b, qi, 0)),
        scratch_shapes=[
            pltpu.VMEM((tq, heads), jnp.float32),   # running max per head
            pltpu.VMEM((tq, heads), jnp.float32),   # running softmax denom per head
            pltpu.VMEM((tq, HD), jnp.float32),      # running output accumulator
        ],
        compiler_params=pltpu.CompilerParams(
            dimension_semantics=("parallel", "parallel", "arbitrary")),
        cost_estimate=cost,
    )(q, k, v)
    return out[:, :N, :] if n_pad != N else out


# ----------------------------------------------------------------------------
# CrossAttention2 parameters / forward
# ----------------------------------------------------------------------------
def init_cross_attention2(key, query_dim, context_dim=None, heads=8, dim_head=64,
                          dtype=jnp.float32):
    context_dim = query_dim if context_dim is None else context_dim
    inner_dim = dim_head * heads
    k_q, k_k, k_v, k_o, k_ob = jax.random.split(key, 5)
    s = 0.02
    params = {   # PyTorch nn.Linear layout: (out_features, in_features)
        "to_q_w": jax.random.normal(k_q, (inner_dim, query_dim), dtype) * s,
        "to_k_w": jax.random.normal(k_k, (inner_dim, context_dim), dtype) * s,
        "to_v_w": jax.random.normal(k_v, (inner_dim, context_dim), dtype) * s,
        "to_out_w": jax.random.normal(k_o, (query_dim, inner_dim), dtype) * s,
        "to_out_b": jax.random.normal(k_ob, (query_dim,), dtype) * s,
    }
    cfg = {"heads": heads, "dim_head": dim_head, "scale": dim_head ** (-0.5)}
    return params, cfg


def prepare_kernel_params(params):
    """One-time weight prep: transpose to (in, out) and fuse K/V (and Q/K/V)."""
    wq, wk, wv = params["to_q_w"], params["to_k_w"], params["to_v_w"]
    prepared = {
        "wq_t": wq.T,                                   # (Cq, HD)
        "wkv_t": jnp.concatenate([wk, wv], axis=0).T,   # (Cctx, 2*HD) fused K/V
        "wout_t": params["to_out_w"].T,                 # (HD, Cq)
        "bout": params["to_out_b"].reshape(1, -1),
    }
    if wq.shape[1] == wk.shape[1]:   # query_dim == context_dim -> to_qkv equivalent
        prepared["wqkv_t"] = jnp.concatenate([wq, wk, wv], axis=0).T   # (Cq, 3*HD)
    return prepared


def cross_attention2_forward(prepared, cfg, x, context=None, mask=None):
    # x: (B, N, query_dim); context: (B, M, context_dim) or None (self-attention)
    B, N, Cq = x.shape
    h, d = cfg["heads"], cfg["dim_head"]
    hd = h * d

    if mask is not None:
        # TODO(synk): boolean key-padding mask path not fused into the kernel (unused here).
        raise NotImplementedError("mask not supported in this synthetic kernel")

    if context is None and "wqkv_t" in prepared:
        # self-attention: fused q/k/v projection (single HBM read of x)
        qkv = pallas_linear(x.reshape(B * N, Cq), prepared["wqkv_t"]).reshape(B, N, 3 * hd)
        q, k, v = qkv[..., :hd], qkv[..., hd:2 * hd], qkv[..., 2 * hd:]
    else:
        ctx = x if context is None else context
        M, Cc = ctx.shape[1], ctx.shape[2]
        q = pallas_linear(x.reshape(B * N, Cq), prepared["wq_t"]).reshape(B, N, hd)
        kv = pallas_linear(ctx.reshape(B * M, Cc), prepared["wkv_t"]).reshape(B, M, 2 * hd)
        k, v = kv[..., :hd], kv[..., hd:]

    # attention core: heads handled inside the kernel (no (b h) transposes).
    out = pallas_attention(q, k, v, heads=h, dim_head=d, scale=cfg["scale"])  # (B, N, hd)

    # to_out: Linear(inner_dim, query_dim) + Dropout(0.0) (identity in eval)
    y = pallas_linear(out.reshape(B * N, hd), prepared["wout_t"], prepared["bout"])
    return y.reshape(B, N, -1)


# ----------------------------------------------------------------------------
# Pure-JAX reference (for correctness sanity check)
# ----------------------------------------------------------------------------
def reference_forward(params, cfg, x, context=None):
    B, N, _ = x.shape
    h, d = cfg["heads"], cfg["dim_head"]
    ctx = x if context is None else context
    M = ctx.shape[1]
    q = x @ params["to_q_w"].T
    k = ctx @ params["to_k_w"].T
    v = ctx @ params["to_v_w"].T
    q = q.reshape(B, N, h, d).transpose(0, 2, 1, 3).reshape(B * h, N, d)
    k = k.reshape(B, M, h, d).transpose(0, 2, 1, 3).reshape(B * h, M, d)
    v = v.reshape(B, M, h, d).transpose(0, 2, 1, 3).reshape(B * h, M, d)
    sim = jnp.einsum("bid,bjd->bij", q.astype(jnp.float32), k.astype(jnp.float32)) * cfg["scale"]
    attn = jax.nn.softmax(sim, axis=-1)
    out = jnp.einsum("bij,bjd->bid", attn, v.astype(jnp.float32))
    out = out.reshape(B, h, N, d).transpose(0, 2, 1, 3).reshape(B, N, h * d)
    return out @ params["to_out_w"].T + params["to_out_b"]


# ----------------------------------------------------------------------------
if __name__ == "__main__":
    key = jax.random.PRNGKey(0)
    k_param, k_x, k_ctx = jax.random.split(key, 3)

    # small shapes: batch=2, seq=16, query_dim=32, heads=4, dim_head=16, context seq=8
    B, N, M = 2, 16, 8
    query_dim, context_dim = 32, 32
    heads, dim_head = 4, 16

    params, cfg = init_cross_attention2(k_param, query_dim, context_dim,
                                        heads=heads, dim_head=dim_head)
    prepared = prepare_kernel_params(params)

    x = jax.random.normal(k_x, (B, N, query_dim), jnp.float32)
    context = jax.random.normal(k_ctx, (B, M, context_dim), jnp.float32)

    # cross-attention call (context provided)
    y = cross_attention2_forward(prepared, cfg, x, context)
    y = jax.block_until_ready(y)

    # self-attention call (context=None -> fused to_qkv path)
    y_self = cross_attention2_forward(prepared, cfg, x, None)
    y_self = jax.block_until_ready(y_self)

    # sanity check against a pure-JAX reference
    y_ref = reference_forward(params, cfg, x, context)
    y_self_ref = reference_forward(params, cfg, x, None)
    assert y.shape == (B, N, query_dim)
    assert jnp.allclose(y, y_ref, atol=1e-3, rtol=1e-3)
    assert jnp.allclose(y_self, y_self_ref, atol=1e-3, rtol=1e-3)

    print("KERNEL_OK")
</pallas_src>

<mosaic_0001>
module attributes {stable_mosaic.version = 11 : i64} {
  func.func @_matmul_kernel(%arg0: i32, %arg1: memref<32x32xf32, #tpu.memory_space<vmem>>, %arg2: memref<32x64xf32, #tpu.memory_space<vmem>>, %arg3: memref<32x64xf32, #tpu.memory_space<vmem>>) attributes {dimension_semantics = [#tpu.dimension_semantics<parallel>], iteration_bounds = array<i64: 1>, scalar_prefetch = 0 : i64, scratch_operands = 0 : i64, tpu.core_type = #tpu.core_type<tc>, window_params = [{transform_indices = @transform_0, window_bounds = array<i64: 32, 32>}, {pipeline_mode = #tpu.pipeline_mode<synchronous>, transform_indices = @transform_1, window_bounds = array<i64: 32, 64>}, {transform_indices = @transform_2, window_bounds = array<i64: 32, 64>}]} {
    %c0 = arith.constant 0 : index
    %c0_0 = arith.constant 0 : index
    %0 = vector.load %arg1[%c0, %c0_0] : memref<32x32xf32, #tpu.memory_space<vmem>>, vector<32x32xf32>
    %c0_1 = arith.constant 0 : index
    %c0_2 = arith.constant 0 : index
    %1 = vector.load %arg2[%c0_1, %c0_2] : memref<32x64xf32, #tpu.memory_space<vmem>>, vector<32x64xf32>
    %cst = arith.constant dense<0.000000e+00> : vector<32x64xf32>
    %2 = tpu.matmul %0, %1, %cst {dimension_numbers = #tpu.dot_dimension_numbers<[1], [0], [0], [1], [0, 0, 1, 1], [], []>} : vector<32x32xf32>, vector<32x64xf32>, vector<32x64xf32> -> vector<32x64xf32>
    %c0_3 = arith.constant 0 : index
    %c0_4 = arith.constant 0 : index
    %3 = vector.load %arg3[%c0_3, %c0_4] : memref<32x64xf32, #tpu.memory_space<vmem>>, vector<32x64xf32>
    tpu.vector_store %arg3[%c0_3, %c0_4], %2 {strides = array<i32>} : memref<32x64xf32, #tpu.memory_space<vmem>>, vector<32x64xf32>,
    return
  }
  func.func @transform_0(%arg0: i32) -> (i32, i32) {
    %c0_i32 = arith.constant 0 : i32
    %c0_i32_0 = arith.constant 0 : i32
    return %arg0, %c0_i32 : i32, i32
  }
  func.func @transform_1(%arg0: i32) -> (i32, i32) {
    %c0_i32 = arith.constant 0 : i32
    %c0_i32_0 = arith.constant 0 : i32
    %c0_i32_1 = arith.constant 0 : i32
    return %c0_i32, %c0_i32_0 : i32, i32
  }
  func.func @transform_2(%arg0: i32) -> (i32, i32) {
    %c0_i32 = arith.constant 0 : i32
    %c0_i32_0 = arith.constant 0 : i32
    return %arg0, %c0_i32 : i32, i32
  }
}

</mosaic_0001>

<llo_original>
// kernel: tpu_custom_call.1
$region0: #{tpu_custom_call.1}
  #allocation0 [shape = 'u32[]', space=smem, size = 0x4, offset = 0x4, fixed_abs, tag = 'smem constant byte address 0x4 - core index']
  #allocation1 [shape = 'u32[72,128]{1,0:T(1,128)}', space=vmem, size = 0x9000, scoped, tag = 'internal scratch']
  %s0 = inlined_call_operand.hbm [shape: f32[32,32], index: 0, kind: input, shape index: {}]
  %s1 = inlined_call_operand.hbm [shape: f32[32,64], index: 1, kind: input, shape index: {}]
  %s2 = inlined_call_operand.hbm [shape: f32[32,64], index: 2, kind: output, shape index: {}]
  %s3 = sld [smem:[#allocation0]]
  $region26: #{tpu_custom_call.1} parent=0
    _
  %s5 = ssub.s32 1, %s3
  %s6 = scalar_select 0, %s5, %s3
  $region1: #{tpu_custom_call.1} parent=0
    #allocation2 [shape = 'u8[16384]{0}', space=vmem, size = 0x4000, scoped, tag = 'input window, operand 0, single buffered']
    #allocation3 [shape = 's32[1]{0}', space=sflag, size = 0x4, scoped, tag = 'scoped memory for tpu_custom_call.1']
    #allocation4 [shape = 's32[1]{0}', space=sflag, size = 0x4, scoped, tag = 'scoped memory for tpu_custom_call.1']
    #allocation5 [shape = 'u8[16384]{0}', space=vmem, size = 0x4000, scoped, tag = 'input window, operand 1, single buffered']
    #allocation6 [shape = 's32[1]{0}', space=sflag, size = 0x4, scoped, tag = 'scoped memory for tpu_custom_call.1']
    #allocation7 [shape = 'u8[16384]{0}', space=vmem, size = 0x4000, scoped, tag = 'output window, operand 0, single buffered']
    %7 = vsyncpa [#allocation3], 0
    %8 = vsyncpa [#allocation6], 0
    %9 = vsyncpa [#allocation4], 0
    // Predicated region
    $region2: #{tpu_custom_call.1} parent=1 // pred_check
      _
    $region3: #{tpu_custom_call.1} parent=1 // pred_check_branch
      %11 = sbr.rel (0) target = $region5
    $region4: #{tpu_custom_call.1} parent=1 // pred_region
      %13 = vsyncadd [#allocation3], 0
      %s14 = sshll.u32 %s0, 4
      %s15 = int_to_ptr.hbm [resolvable:$true] %s14
      %s16 = sshll.u32 [#allocation2], 4
      %s17 = int_to_ptr.vmem [resolvable:$true] %s16
      %22 = dma.hbm_to_vmem [thread:$0]  %s15, 512, %s17, [#allocation3], 128, 128, 8
    $region5: #{tpu_custom_call.1} parent=1 // pred_fallthru
      _
    // Predicated region
    $region6: #{tpu_custom_call.1} parent=1 // pred_check
      _
    $region7: #{tpu_custom_call.1} parent=1 // pred_check_branch
      %24 = sbr.rel (0) target = $region9
    $region8: #{tpu_custom_call.1} parent=1 // pred_region
      %26 = vsyncadd [#allocation6], 0
      %s27 = sshll.u32 %s1, 4
      %s28 = int_to_ptr.hbm [resolvable:$true] %s27
      %s29 = sshll.u32 [#allocation5], 4
      %s30 = int_to_ptr.vmem [resolvable:$true] %s29
      %35 = dma.hbm_to_vmem [thread:$0]  %s28, 512, %s30, [#allocation6], 128, 128, 8
    $region9: #{tpu_custom_call.1} parent=1 // pred_fallthru
      _
    // Predicated region
    $region10: #{tpu_custom_call.1} parent=1 // pred_check
      _
    $region11: #{tpu_custom_call.1} parent=1 // pred_check_branch
      %37 = sbr.rel (0) target = $region13
    $region12: #{tpu_custom_call.1} parent=1 // pred_region
      %39 = dma.done [#allocation3], 512
    $region13: #{tpu_custom_call.1} parent=1 // pred_fallthru
      _
    // Predicated region
    $region14: #{tpu_custom_call.1} parent=1 // pred_check
      _
    $region15: #{tpu_custom_call.1} parent=1 // pred_check_branch
      %41 = sbr.rel (0) target = $region17
    $region16: #{tpu_custom_call.1} parent=1 // pred_region
      %43 = dma.done [#allocation6], 512
    $region17: #{tpu_custom_call.1} parent=1 // pred_fallthru
      _
    %v44 = vld [vmem:[#allocation2] sm:$0xff]
    %v45 = vld [vmem:[#allocation2 + $0x8] sm:$0xff]
    %v46 = vld [vmem:[#allocation2 + $0x10] sm:$0xff]
    %v47 = vld [vmem:[#allocation2 + $0x18] sm:$0xff]
    %v48 = vld [vmem:[#allocation5] sm:$0xff]
    %v49 = vld [vmem:[#allocation5 + $0x8] sm:$0xff]
    %v50 = vld [vmem:[#allocation5 + $0x10] sm:$0xff]
    %v51 = vld [vmem:[#allocation5 + $0x18] sm:$0xff]
    %vm52 = vcmask 261120
    %v54 = vsel %vm52, %v44, 0
    %v57 = vsel %vm52, %v45, 0
    %v60 = vsel %vm52, %v46, 0
    %v63 = vsel %vm52, %v47, 0
    %65 = vmatpush.msra.mxu0 0.0
    %66 = vmatpush.msra.mxu0 0.0
    %67 = vmatpush.msra.mxu0 0.0
    %68 = vmatpush.msra.mxu0 0.0
    %69 = vmatpush.msra.mxu0 0.0
    %70 = vmatpush.msra.mxu0 0.0
    %71 = vmatpush.msra.mxu0 0.0
    %72 = vmatpush.msra.mxu0 0.0
    %73 = vmatpush.msra.mxu0 0.0
    %74 = vmatpush.msra.mxu0 0.0
    %75 = vmatpush.msra.mxu0 0.0
    %76 = vmatpush.msra.mxu0 0.0
    %77 = vmatpush.msra.mxu0 %v51
    %78 = vmatpush.msra.mxu0 %v50
    %79 = vmatpush.msra.mxu0 %v49
    %80 = vmatpush.msra.mxu0 %v48
    %81 = vmatmul.f32.gmra.mxu0 %v54
    %v82 = vpop.f32.mrf.mxu0
    %v83 = vadd.f32 0.0, %v82
    %84 = vmatmul.f32.gmra.mxu0 %v57
    %v85 = vpop.f32.mrf.mxu0
    %v86 = vadd.f32 0.0, %v85
    %87 = vmatmul.f32.gmra.mxu0 %v60
    %v88 = vpop.f32.mrf.mxu0
    %v89 = vadd.f32 0.0, %v88
    %90 = vmatmul.f32.gmra.mxu0 %v63
    %v91 = vpop.f32.mrf.mxu0
    %v92 = vadd.f32 0.0, %v91
    %93 = vdwg.mxu0
    %vm94 = vcmask 523264
    %95 = vst.msk [vmem:[#allocation7] sm:$0xff] %vm94, %v83
    %96 = vst.msk [vmem:[#allocation7 + $0x8] sm:$0xff] %vm94, %v86
    %97 = vst.msk [vmem:[#allocation7 + $0x10] sm:$0xff] %vm94, %v89
    %98 = vst.msk [vmem:[#allocation7 + $0x18] sm:$0xff] %vm94, %v92
    // Predicated region
    $region18: #{tpu_custom_call.1} parent=1 // pred_check
      _
    $region19: #{tpu_custom_call.1} parent=1 // pred_check_branch
      %100 = sbr.rel (0) target = $region21
    $region20: #{tpu_custom_call.1} parent=1 // pred_region
      %102 = vsyncadd [#allocation4], 0
      %s103 = sshll.u32 [#allocation7], 4
      %s104 = int_to_ptr.vmem [resolvable:$true] %s103
      %s105 = sshll.u32 %s2, 4
      %s106 = int_to_ptr.hbm [resolvable:$true] %s105
      %111 = dma.vmem_to_hbm [thread:$0]  %s104, 512, %s106, [#allocation4], 128, 128, 8
    $region21: #{tpu_custom_call.1} parent=1 // pred_fallthru
      _
    // Predicated region
    $region22: #{tpu_custom_call.1} parent=1 // pred_check
      _
    $region23: #{tpu_custom_call.1} parent=1 // pred_check_branch
      %113 = sbr.rel (0) target = $region25
    $region24: #{tpu_custom_call.1} parent=1 // pred_region
      %115 = dma.done [#allocation4], 512
    $region25: #{tpu_custom_call.1} parent=1 // pred_fallthru
      _
    %116 = vsyncpa [#allocation3], 1
    %117 = vsyncpa [#allocation6], 1
    %118 = vsyncpa [#allocation4], 1

</llo_original>
